<compile_context>
chip_gen: v6e
topology: v6e:2x2x1
jax: 0.10.0
libtpu: 0.0.40
codegen_flags: <defaults>
</compile_context>

<pallas_src>
import functools

import jax
import jax.numpy as jnp
from jax.experimental import pallas as pl
from jax.experimental.pallas import tpu as pltpu


def _round_up(x, m):
    return -(-x // m) * m


def _tile_partial_sum(w_ref, pred_ref, gt_ref, *, use_target_weight, total_rows,
                      tile_r, hw, lanes_out, need_mask):
    """Sum of squared (weighted) diffs over this tile, folded to (slab, lanes_out)."""
    i = pl.program_id(0)
    row0 = i * tile_r                      # first logical row of this tile

    slab = min(8, tile_r)                  # rows processed per streaming step
    n_slabs = max(1, tile_r // slab)       # tile_r is a multiple of 8 when >= 8
    n_groups = hw // lanes_out             # lane groups folded into the output

    def slab_body(s, acc):
        if isinstance(s, int):
            r = s * slab
        else:
            r = pl.multiple_of(s * slab, slab)
        p = pred_ref[pl.ds(r, slab), :].astype(jnp.float32)
        t = gt_ref[pl.ds(r, slab), :].astype(jnp.float32)
        d = p - t
        if use_target_weight:
            w_start = row0 + r
            if slab == 8:
                w_start = pl.multiple_of(w_start, 8)
            d = d * w_ref[pl.ds(w_start, slab), :]          # (slab,1) bcast over HW
        if need_mask:
            # Mask rows past B*J (select AFTER the weight multiply so garbage
            # NaN/Inf in the padded region cannot leak into the sum).
            rid = row0 + r + jax.lax.broadcasted_iota(jnp.int32, (slab, 1), 0)
            d = jnp.where(rid < total_rows, d, 0.0)
        sq = d * d                                          # (slab, HW) f32
        # Fold lane groups with vreg-aligned adds (no XLU relayout).
        for g in range(n_groups):
            acc = acc + sq[:, g * lanes_out:(g + 1) * lanes_out]
        return acc

    acc0 = jnp.zeros((slab, lanes_out), jnp.float32)
    if n_slabs == 1:
        return slab_body(0, acc0)
    return jax.lax.fori_loop(0, n_slabs, slab_body, acc0,
                             unroll=True if n_slabs <= 8 else False)


def _joints_partials_kernel(w_ref, pred_ref, gt_ref, out_ref, **params):
    # One (slab, lanes_out) partial per grid step; steps fully independent.
    out_ref[0] = _tile_partial_sum(w_ref, pred_ref, gt_ref, **params)


def _joints_accum_kernel(w_ref, pred_ref, gt_ref, out_ref, **params):
    # Resident (slab, lanes_out) accumulator; grid axis is "arbitrary".
    @pl.when(pl.program_id(0) == 0)
    def _():
        out_ref[...] = jnp.zeros_like(out_ref)
    out_ref[...] += _tile_partial_sum(w_ref, pred_ref, gt_ref, **params)


def _single_tensorcore_chip():
    """True on v5e / v6e (1 TC/chip) where the resident accumulator wins."""
    try:
        kind = jax.devices()[0].device_kind.lower().replace(" ", "")
    except Exception:
        return False
    return any(tag in kind for tag in ("v5e", "v5lite", "v6e", "v6lite"))


def joints_mse_loss(output, target, target_weight, use_target_weight=True,
                    *, max_tile_bytes=4 * 1024 * 1024, max_tile_rows=1024,
                    resident_accumulator=None):
    """Pallas implementation of JointsMSELoss.forward.

    output, target: (B, J, H, W)   (f32 or bf16)
    target_weight : (B, J, 1)
    """
    B, J, H, W = output.shape
    HW = H * W
    R = B * J

    # Zero-copy flattening (contiguous reshapes, no transposes, no dtype casts).
    pred = output.reshape(R, HW)
    gt = target.reshape(R, HW)

    itemsize = max(jnp.dtype(output.dtype).itemsize, jnp.dtype(target.dtype).itemsize)
    row_bytes = max(HW * itemsize, 1)

    # --- Row-tile size -------------------------------------------------------
    if R <= 8:
        tile_r = R                         # tiny case: one full-height tile
    else:
        cap = max(8, min((max_tile_bytes // row_bytes) // 8 * 8,
                         max_tile_rows, _round_up(R, 8)))
        # Even number of tiles >= 2 so both v7x TensorCores get balanced work;
        # grow until the per-tile row count fits the VMEM byte cap.
        n_tiles = 2
        while _round_up(-(-R // n_tiles), 8) > cap:
            n_tiles += 2
        tile_r = _round_up(-(-R // n_tiles), 8)
    grid_r = -(-R // tile_r)

    rows_out = min(8, tile_r)
    lanes_out = 128 if HW % 128 == 0 else HW   # lane-group fold only if aligned
    need_mask = (R % tile_r) != 0

    # Target weights: single resident f32 VMEM copy, padded so in-kernel
    # pl.ds slices are always in-bounds (pad rows are masked / never counted).
    R_pad = grid_r * tile_r
    w = target_weight.reshape(R, 1).astype(jnp.float32)
    if R_pad != R:
        w = jnp.pad(w, ((0, R_pad - R), (0, 0)))

    if resident_accumulator is None:
        resident_accumulator = _single_tensorcore_chip()

    params = dict(use_target_weight=use_target_weight, total_rows=R,
                  tile_r=tile_r, hw=HW, lanes_out=lanes_out, need_mask=need_mask)

    in_specs = [
        pl.BlockSpec((R_pad, 1), lambda i: (0, 0)),       # resident weights
        pl.BlockSpec((tile_r, HW), lambda i: (i, 0)),     # pred row tile
        pl.BlockSpec((tile_r, HW), lambda i: (i, 0)),     # gt   row tile
    ]

    out_bytes = (grid_r if not resident_accumulator else 1) * rows_out * lanes_out * 4
    cost = pl.CostEstimate(
        flops=4 * R * HW,
        transcendentals=0,
        bytes_accessed=2 * R * HW * itemsize + R_pad * 4 + out_bytes,
    )

    if resident_accumulator:
        # Single resident accumulator: no per-step output DMA, no partials
        # array, no separate XLA reduce.  Grid must be sequential.
        result = pl.pallas_call(
            functools.partial(_joints_accum_kernel, **params),
            out_shape=jax.ShapeDtypeStruct((rows_out, lanes_out), jnp.float32),
            grid=(grid_r,),
            in_specs=in_specs,
            out_specs=pl.BlockSpec((rows_out, lanes_out), lambda i: (0, 0)),
            compiler_params=pltpu.CompilerParams(
                dimension_semantics=("arbitrary",),
                vmem_limit_bytes=48 * 1024 * 1024),
            cost_estimate=cost,
        )(w, pred, gt)
    else:
        # Per-step (8, lanes_out) partials: independent steps, megacore on v7x.
        result = pl.pallas_call(
            functools.partial(_joints_partials_kernel, **params),
            out_shape=jax.ShapeDtypeStruct((grid_r, rows_out, lanes_out), jnp.float32),
            grid=(grid_r,),
            in_specs=in_specs,
            out_specs=pl.BlockSpec((1, rows_out, lanes_out), lambda i: (i, 0, 0)),
            compiler_params=pltpu.CompilerParams(
                dimension_semantics=("parallel",),
                vmem_limit_bytes=48 * 1024 * 1024),
            cost_estimate=cost,
        )(w, pred, gt)

    # Final tiny reduce + scale: 0.5 * per-joint MSE averaged over J joints.
    scale = jnp.float32(0.5 / (J * B * HW))
    return jnp.sum(result) * scale


def _reference_loss(output, target, target_weight, use_target_weight=True):
    """Pure-JAX reference matching the PyTorch module exactly (f32 math)."""
    B, J, H, W = output.shape
    pred = output.astype(jnp.float32).reshape(B, J, -1)
    gt = target.astype(jnp.float32).reshape(B, J, -1)
    tw = target_weight.astype(jnp.float32)
    loss = 0.0
    for idx in range(J):
        hp = pred[:, idx, :]
        hg = gt[:, idx, :]
        if use_target_weight:
            wj = tw[:, idx]              # (B, 1)
            hp = hp * wj
            hg = hg * wj
        loss = loss + 0.5 * jnp.mean((hp - hg) ** 2)
    return loss / J


def _check(output, target, target_weight, use_target_weight,
           resident_accumulator=None, rtol=1e-5, atol=1e-6):
    got = jax.block_until_ready(
        joints_mse_loss(output, target, target_weight, use_target_weight,
                        resident_accumulator=resident_accumulator))
    want = _reference_loss(output, target, target_weight, use_target_weight)
    assert jnp.allclose(got, want, rtol=rtol, atol=atol), (
        resident_accumulator, got, want)


if __name__ == "__main__":
    key = jax.random.PRNGKey(0)

    def make(B, J, H, W, key):
        k1, k2, k3 = jax.random.split(key, 3)
        out = jax.random.normal(k1, (B, J, H, W), dtype=jnp.float32)
        tgt = jax.random.normal(k2, (B, J, H, W), dtype=jnp.float32)
        tw = jax.random.uniform(k3, (B, J, 1), dtype=jnp.float32)
        return out, tgt, tw

    # Case 1: basic small shape (B=2, J=4, 16x16); weighted + unweighted,
    # both output strategies (partials / resident accumulator).
    key, k = jax.random.split(key)
    out1, tgt1, tw1 = make(2, 4, 16, 16, k)
    for acc in (False, True):
        _check(out1, tgt1, tw1, True, resident_accumulator=acc)
        _check(out1, tgt1, tw1, False, resident_accumulator=acc)

    # Case 2: B*J = 15 (not a multiple of the 8-row tile) -> remainder masking
    # and padded resident-weight slicing, both strategies.
    key, k = jax.random.split(key)
    out2, tgt2, tw2 = make(3, 5, 16, 16, k)
    for acc in (False, True):
        _check(out2, tgt2, tw2, True, resident_accumulator=acc)

    # Case 3: B*J = 68, HW = 576 (not a multiple of 128) -> multi-slab streaming
    # fori_loop, lane-fold fallback, 2-step grid with a ragged last tile.
    key, k = jax.random.split(key)
    out3, tgt3, tw3 = make(4, 17, 24, 24, k)
    for acc in (False, True):
        _check(out3, tgt3, tw3, True, resident_accumulator=acc)

    # Case 4: bf16 heatmaps stay bf16 across the DMA; cast to f32 in VMEM.
    _check(out1.astype(jnp.bfloat16), tgt1.astype(jnp.bfloat16), tw1, True,
           resident_accumulator=None, rtol=1e-3, atol=1e-5)

    # Case 5: auto-selected strategy (device-kind based default).
    _check(out3, tgt3, tw3, True, resident_accumulator=None)

    print("KERNEL_OK")
</pallas_src>

<mosaic_0001>
module attributes {stable_mosaic.version = 11 : i64} {
  func.func @_joints_partials_kernel(%arg0: i32, %arg1: memref<8x1xf32, #tpu.memory_space<vmem>>, %arg2: memref<8x256xf32, #tpu.memory_space<vmem>>, %arg3: memref<8x256xf32, #tpu.memory_space<vmem>>, %arg4: memref<1x8x128xf32, #tpu.memory_space<vmem>>) attributes {dimension_semantics = [#tpu.dimension_semantics<parallel>], iteration_bounds = array<i64: 1>, scalar_prefetch = 0 : i64, scratch_operands = 0 : i64, tpu.core_type = #tpu.core_type<tc>, window_params = [{pipeline_mode = #tpu.pipeline_mode<synchronous>, transform_indices = @transform_0, window_bounds = array<i64: 8, 1>}, {transform_indices = @transform_1, window_bounds = array<i64: 8, 256>}, {transform_indices = @transform_2, window_bounds = array<i64: 8, 256>}, {transform_indices = @transform_3, window_bounds = array<i64: 1, 8, 128>}]} {
    %c8_i32 = arith.constant 8 : i32
    %0 = arith.muli %arg0, %c8_i32 : i32
    %cst = arith.constant 0.000000e+00 : f32
    %1 = vector.broadcast %cst : f32 to vector<8x128xf32>
    %c0 = arith.constant 0 : index
    %c0_0 = arith.constant 0 : index
    %2 = vector.load %arg2[%c0, %c0_0] : memref<8x256xf32, #tpu.memory_space<vmem>>, vector<8x256xf32>
    %c0_1 = arith.constant 0 : index
    %c0_2 = arith.constant 0 : index
    %3 = vector.load %arg3[%c0_1, %c0_2] : memref<8x256xf32, #tpu.memory_space<vmem>>, vector<8x256xf32>
    %4 = arith.subf %2, %3 : vector<8x256xf32>
    %c0_i32 = arith.constant 0 : i32
    %5 = arith.addi %0, %c0_i32 : i32
    %6 = tpu.assume_multiple %5, 8 : i32
    %7 = arith.index_cast %6 : i32 to index
    %c0_3 = arith.constant 0 : index
    %8 = vector.load %arg1[%7, %c0_3] : memref<8x1xf32, #tpu.memory_space<vmem>>, vector<8x1xf32>
    %9 = vector.broadcast %8 : vector<8x1xf32> to vector<8x256xf32>
    %10 = arith.mulf %4, %9 : vector<8x256xf32>
    %11 = arith.mulf %10, %10 : vector<8x256xf32>
    %12 = vector.extract_strided_slice %11 {offsets = [0, 0], sizes = [8, 128], strides = [1, 1]} : vector<8x256xf32> to vector<8x128xf32>
    %13 = arith.addf %1, %12 : vector<8x128xf32>
    %14 = vector.extract_strided_slice %11 {offsets = [0, 128], sizes = [8, 128], strides = [1, 1]} : vector<8x256xf32> to vector<8x128xf32>
    %15 = arith.addf %13, %14 : vector<8x128xf32>
    %c0_4 = arith.constant 0 : index
    %c0_5 = arith.constant 0 : index
    %c0_6 = arith.constant 0 : index
    %16 = vector.load %arg4[%c0_4, %c0_5, %c0_6] : memref<1x8x128xf32, #tpu.memory_space<vmem>>, vector<1x8x128xf32>
    %17 = vector.shape_cast %16 : vector<1x8x128xf32> to vector<8x128xf32>
    %18 = vector.shape_cast %15 : vector<8x128xf32> to vector<1x8x128xf32>
    tpu.vector_store %arg4[%c0_4, %c0_5, %c0_6], %18 {strides = array<i32>} : memref<1x8x128xf32, #tpu.memory_space<vmem>>, vector<1x8x128xf32>,
    return
  }
  func.func @transform_0(%arg0: i32) -> (i32, i32) {
    %c0_i32 = arith.constant 0 : i32
    %c0_i32_0 = arith.constant 0 : i32
    %c0_i32_1 = arith.constant 0 : i32
    return %c0_i32, %c0_i32_0 : i32, i32
  }
  func.func @transform_1(%arg0: i32) -> (i32, i32) {
    %c0_i32 = arith.constant 0 : i32
    %c0_i32_0 = arith.constant 0 : i32
    return %arg0, %c0_i32 : i32, i32
  }
  func.func @transform_2(%arg0: i32) -> (i32, i32) {
    %c0_i32 = arith.constant 0 : i32
    %c0_i32_0 = arith.constant 0 : i32
    return %arg0, %c0_i32 : i32, i32
  }
  func.func @transform_3(%arg0: i32) -> (i32, i32, i32) {
    %c0_i32 = arith.constant 0 : i32
    %c0_i32_0 = arith.constant 0 : i32
    %c0_i32_1 = arith.constant 0 : i32
    return %arg0, %c0_i32, %c0_i32_0 : i32, i32, i32
  }
}

</mosaic_0001>

<llo_original>
// kernel: tpu_custom_call.1
$region0: #{tpu_custom_call.1}
  #allocation0 [shape = 'u32[]', space=smem, size = 0x4, offset = 0x4, fixed_abs, tag = 'smem constant byte address 0x4 - core index']
  #allocation1 [shape = 'u32[144,128]{1,0:T(1,128)}', space=vmem, size = 0x12000, scoped, tag = 'internal scratch']
  %s0 = inlined_call_operand.vmem [shape: f32[8,1], index: 0, kind: input, shape index: {}]
  %s1 = inlined_call_operand.hbm [shape: f32[8,256], index: 1, kind: input, shape index: {}]
  %s2 = inlined_call_operand.hbm [shape: f32[8,256], index: 2, kind: input, shape index: {}]
  %s3 = inlined_call_operand.hbm [shape: f32[1,8,128], index: 3, kind: output, shape index: {}]
  %s4 = sld [smem:[#allocation0]]
  $region30: #{tpu_custom_call.1} parent=0
    _
  %s6 = ssub.s32 1, %s4
  %s7 = scalar_select 0, %s6, %s4
  $region1: #{tpu_custom_call.1} parent=0
    #allocation2 [shape = 'u8[8192]{0}', space=vmem, size = 0x2000, scoped, tag = 'input window, operand 1, single buffered']
    #allocation3 [shape = 's32[1]{0}', space=sflag, size = 0x4, scoped, tag = 'scoped memory for tpu_custom_call.1']
    #allocation4 [shape = 's32[1]{0}', space=sflag, size = 0x4, scoped, tag = 'scoped memory for tpu_custom_call.1']
    #allocation5 [shape = 'u8[8192]{0}', space=vmem, size = 0x2000, scoped, tag = 'input window, operand 2, single buffered']
    #allocation6 [shape = 's32[1]{0}', space=sflag, size = 0x4, scoped, tag = 'scoped memory for tpu_custom_call.1']
    #allocation7 [shape = 'u8[4096]{0}', space=vmem, size = 0x1000, scoped, tag = 'output window, operand 0, single buffered']
    %8 = vsyncpa [#allocation3], 0
    %9 = vsyncpa [#allocation6], 0
    %10 = vsyncpa [#allocation4], 0
    // Predicated region
    $region2: #{tpu_custom_call.1} parent=1 // pred_check
      _
    $region3: #{tpu_custom_call.1} parent=1 // pred_check_branch
      %12 = sbr.rel (0) target = $region5
    $region4: #{tpu_custom_call.1} parent=1 // pred_region
      _
    $region5: #{tpu_custom_call.1} parent=1 // pred_fallthru
      _
    // Predicated region
    $region6: #{tpu_custom_call.1} parent=1 // pred_check
      _
    $region7: #{tpu_custom_call.1} parent=1 // pred_check_branch
      %14 = sbr.rel (0) target = $region9
    $region8: #{tpu_custom_call.1} parent=1 // pred_region
      %s16 = ssub.s32 256, 256
      %17 = vsyncadd [#allocation3], %s16
      %s19 = sshll.u32 [#allocation2], 4
      %s20 = int_to_ptr.vmem [resolvable:$true] %s19
      %22 = dma.hbm_to_vmem [thread:$0]  %s1, 256, %s20, [#allocation3]
    $region9: #{tpu_custom_call.1} parent=1 // pred_fallthru
      _
    // Predicated region
    $region10: #{tpu_custom_call.1} parent=1 // pred_check
      _
    $region11: #{tpu_custom_call.1} parent=1 // pred_check_branch
      %24 = sbr.rel (0) target = $region13
    $region12: #{tpu_custom_call.1} parent=1 // pred_region
      %s26 = ssub.s32 256, 256
      %27 = vsyncadd [#allocation6], %s26
      %s29 = sshll.u32 [#allocation5], 4
      %s30 = int_to_ptr.vmem [resolvable:$true] %s29
      %32 = dma.hbm_to_vmem [thread:$0]  %s2, 256, %s30, [#allocation6]
    $region13: #{tpu_custom_call.1} parent=1 // pred_fallthru
      _
    // Predicated region
    $region14: #{tpu_custom_call.1} parent=1 // pred_check
      _
    $region15: #{tpu_custom_call.1} parent=1 // pred_check_branch
      %34 = sbr.rel (0) target = $region17
    $region16: #{tpu_custom_call.1} parent=1 // pred_region
      %35 = dma.done [#allocation3], 256
    $region17: #{tpu_custom_call.1} parent=1 // pred_fallthru
      _
    // Predicated region
    $region18: #{tpu_custom_call.1} parent=1 // pred_check
      _
    $region19: #{tpu_custom_call.1} parent=1 // pred_check_branch
      %37 = sbr.rel (0) target = $region21
    $region20: #{tpu_custom_call.1} parent=1 // pred_region
      %38 = dma.done [#allocation6], 256
    $region21: #{tpu_custom_call.1} parent=1 // pred_fallthru
      _
    %s39 = smul.u32 0, 8
    %v40 = vld [vmem:[#allocation2] sm:$0xff]
    %v41 = vld [vmem:[#allocation2 + $0x8] sm:$0xff]
    %v42 = vld [vmem:[#allocation5] sm:$0xff]
    %v43 = vld [vmem:[#allocation5 + $0x8] sm:$0xff]
    %v44 = vsub.f32 %v40, %v42
    %v45 = vsub.f32 %v41, %v43
    %s46 = scalar_lea.vmem %s0, %s39
    %v47 = vld [vmem:[%s46] sm:$0xff]
    %49 = vset.pattern.permute.xlu0 0
    %50 = vperm.xlu0 %49, %v47
    %v51 = vpop.permute.xlu0 %50
    %v53 = vmul.f32 %v44, %v51
    %v54 = vmul.f32 %v45, %v51
    %v55 = vmul.f32 %v53, %v53
    %v56 = vmul.f32 %v54, %v54
    %v57 = vadd.f32 %v55, 0.0
    %v58 = vadd.f32 %v57, %v56
    %59 = vst [vmem:[#allocation7] sm:$0xff] %v58
    // Predicated region
    $region22: #{tpu_custom_call.1} parent=1 // pred_check
      _
    $region23: #{tpu_custom_call.1} parent=1 // pred_check_branch
      %61 = sbr.rel (0) target = $region25
    $region24: #{tpu_custom_call.1} parent=1 // pred_region
      %s63 = ssub.s32 128, 128
      %64 = vsyncadd [#allocation4], %s63
      %s66 = sshll.u32 [#allocation7], 4
      %s67 = int_to_ptr.vmem [resolvable:$true] %s66
      %69 = dma.vmem_to_hbm [thread:$0]  %s67, 128, %s3, [#allocation4]
    $region25: #{tpu_custom_call.1} parent=1 // pred_fallthru
      _
    // Predicated region
    $region26: #{tpu_custom_call.1} parent=1 // pred_check
      _
    $region27: #{tpu_custom_call.1} parent=1 // pred_check_branch
      %71 = sbr.rel (0) target = $region29
    $region28: #{tpu_custom_call.1} parent=1 // pred_region
      %72 = dma.done [#allocation4], 128
    $region29: #{tpu_custom_call.1} parent=1 // pred_fallthru
      _
    %73 = vsyncpa [#allocation3], 1
    %74 = vsyncpa [#allocation6], 1
    %75 = vsyncpa [#allocation4], 1

</llo_original>
